<compile_context>
chip_gen: v7x
topology: tpu7x:2x2x1
jax: 0.10.0
libtpu: 0.0.40
codegen_flags: <defaults>
</compile_context>

<pallas_src>
import math

import jax
import jax.numpy as jnp
from jax.experimental import pallas as pl
from jax.experimental.pallas import tpu as pltpu


def _identity_kernel(x_ref, o_ref):
    # Pure copy: load the whole VMEM tile and store it back.
    o_ref[...] = x_ref[...]


_TARGET_TILE_BYTES = 2 * 1024 * 1024  # ~2 MiB per tile (x4 double-buffered bufs)
_LANE_CANDIDATES = (8192, 4096, 2048, 1024, 512, 256, 128)


def _choose_lanes(total):
    """Pick the last-dim (lane) width for the 2-D view of the flat array.

    Preference order:
      1) widest multiple of 128 dividing `total` whose row count is a
         multiple of 8 (full vreg sublane utilization),
      2) otherwise the widest multiple of 128 dividing `total`,
      3) None if no multiple of 128 divides `total`.
    """
    best_any = None
    for lanes in _LANE_CANDIDATES:
        if total % lanes == 0:
            if best_any is None:
                best_any = lanes
            if (total // lanes) % 8 == 0:
                return lanes
    return best_any


def _choose_tile_rows(rows, lanes, itemsize):
    """Largest row-tile that (a) divides `rows`, (b) is a multiple of 8 or the
    full rows dim, and (c) keeps the tile around _TARGET_TILE_BYTES."""
    if rows <= 8:
        return rows
    row_bytes = lanes * itemsize
    max_rows = max(8, (_TARGET_TILE_BYTES // row_bytes) // 8 * 8)
    cap = min(max_rows, (rows // 8) * 8)
    for cand in range(cap, 0, -8):
        if rows % cand == 0:
            return cand
    # No multiple-of-8 divisor under the cap: take the full axis (valid since a
    # block dim equal to the full array dim is exempt from the (8,128) rule).
    return rows


def _identity_copy_2d(x2d, tile_rows, tile_cols):
    M, N = x2d.shape
    grid = (M // tile_rows, N // tile_cols)
    return pl.pallas_call(
        _identity_kernel,
        out_shape=jax.ShapeDtypeStruct((M, N), x2d.dtype),
        grid_spec=pltpu.PrefetchScalarGridSpec(
            num_scalar_prefetch=0,
            grid=grid,
            in_specs=[pl.BlockSpec((tile_rows, tile_cols), lambda i, j: (i, j))],
            out_specs=pl.BlockSpec((tile_rows, tile_cols), lambda i, j: (i, j)),
        ),
        compiler_params=pltpu.CompilerParams(
            dimension_semantics=("parallel", "parallel"),
        ),
        # Pass-through layer: let XLA alias the output onto the input buffer.
        input_output_aliases={0: 0},
    )(x2d)


class PrintPallas:
    """JAX/Pallas equivalent of the PyTorch `Print` module."""

    def __init__(self, message="Inside print layer"):
        self.message = message

    def __call__(self, x):
        # Host-side prints, matching nn.Module.forward eager semantics.
        # (Under jax.jit these would fire at trace time; use jax.debug.print
        # if per-execution printing is required.)
        print(self.message)
        print(x.shape)

        total = math.prod(x.shape) if x.shape else 1
        if total == 0:
            return x

        lanes = _choose_lanes(total)
        if lanes is None:
            # Element count not a multiple of 128: the module is a semantic
            # no-op, so return x directly rather than paying an extra
            # pad/slice HBM round trip just to run a copy kernel.
            # TODO(synk): masked-tail copy kernel if a Pallas pass is strictly
            # required for ragged sizes.
            return x

        rows = total // lanes
        tile_rows = _choose_tile_rows(rows, lanes, x.dtype.itemsize)

        # Lane-dense 2-D view; reshape only (no padding, no extra HBM traffic).
        x2d = jnp.reshape(x, (rows, lanes))
        y2d = _identity_copy_2d(x2d, tile_rows, lanes)
        return jnp.reshape(y2d, x.shape)


if __name__ == "__main__":
    key = jax.random.PRNGKey(0)
    x = jax.random.normal(key, (2, 4, 16, 16), dtype=jnp.float32)  # NCHW

    layer = PrintPallas()
    y = layer(x)
    y = jax.block_until_ready(y)

    assert y.shape == x.shape and y.dtype == x.dtype
    assert bool(jnp.all(y == x))
    print("KERNEL_OK")
</pallas_src>

<mosaic_0001>
module attributes {stable_mosaic.version = 11 : i64} {
  func.func @_identity_kernel(%arg0: i32, %arg1: i32, %arg2: memref<8x256xf32, #tpu.memory_space<vmem>>, %arg3: memref<8x256xf32, #tpu.memory_space<vmem>>) attributes {dimension_semantics = [#tpu.dimension_semantics<parallel>, #tpu.dimension_semantics<parallel>], iteration_bounds = array<i64: 1, 1>, scalar_prefetch = 0 : i64, scratch_operands = 0 : i64, tpu.core_type = #tpu.core_type<tc>, window_params = [{transform_indices = @transform_0, window_bounds = array<i64: 8, 256>}, {transform_indices = @transform_1, window_bounds = array<i64: 8, 256>}]} {
    %c0 = arith.constant 0 : index
    %c0_0 = arith.constant 0 : index
    %0 = vector.load %arg2[%c0, %c0_0] : memref<8x256xf32, #tpu.memory_space<vmem>>, vector<8x256xf32>
    %c0_1 = arith.constant 0 : index
    %c0_2 = arith.constant 0 : index
    %1 = vector.load %arg3[%c0_1, %c0_2] : memref<8x256xf32, #tpu.memory_space<vmem>>, vector<8x256xf32>
    tpu.vector_store %arg3[%c0_1, %c0_2], %0 {strides = array<i32>} : memref<8x256xf32, #tpu.memory_space<vmem>>, vector<8x256xf32>,
    return
  }
  func.func @transform_0(%arg0: i32, %arg1: i32) -> (i32, i32) {
    %c0_i32 = arith.constant 0 : i32
    return %arg0, %arg1 : i32, i32
  }
  func.func @transform_1(%arg0: i32, %arg1: i32) -> (i32, i32) {
    %c0_i32 = arith.constant 0 : i32
    return %arg0, %arg1 : i32, i32
  }
}

</mosaic_0001>

<llo_original>
// kernel: tpu_custom_call.1
$region0: #{tpu_custom_call.1}
  #allocation0 [shape = 'u32[]', space=smem, size = 0x4, offset = 0x4, fixed_abs, tag = 'smem constant byte address 0x4 - core index']
  #allocation1 [shape = 'u32[144,128]{1,0:T(1,128)}', space=vmem, size = 0x12000, scoped, tag = 'internal scratch']
  %s0 = inlined_call_operand.hbm [shape: f32[8,256], index: 0, kind: input, shape index: {}, may-alias: {0,1}]
  %s1 = inlined_call_operand.hbm [shape: f32[8,256], index: 1, kind: output, shape index: {}, may-alias: {0,1}]
  %s2 = sld [smem:[#allocation0]]
  $region18: #{tpu_custom_call.1} parent=0
    _
  %s4 = ssub.s32 1, %s2
  %s5 = scalar_select 0, %s4, %s2
  $region1: #{tpu_custom_call.1} parent=0
    #allocation2 [shape = 'u8[8192]{0}', space=vmem, size = 0x2000, scoped, tag = 'input window, operand 0, single buffered']
    #allocation3 [shape = 's32[1]{0}', space=sflag, size = 0x4, scoped, tag = 'scoped memory for tpu_custom_call.1']
    #allocation4 [shape = 's32[1]{0}', space=sflag, size = 0x4, scoped, tag = 'scoped memory for tpu_custom_call.1']
    #allocation5 [shape = 'u8[8192]{0}', space=vmem, size = 0x2000, scoped, tag = 'output window, operand 0, single buffered']
    %6 = vsyncpa [#allocation3], 0
    %7 = vsyncpa [#allocation4], 0
    // Predicated region
    $region2: #{tpu_custom_call.1} parent=1 // pred_check
      _
    $region3: #{tpu_custom_call.1} parent=1 // pred_check_branch
      %9 = sbr.rel (0) target = $region5
    $region4: #{tpu_custom_call.1} parent=1 // pred_region
      %s11 = ssub.s32 256, 256
      %12 = vsyncadd [#allocation3], %s11
      %s14 = sshll.u32 [#allocation2], 4
      %s15 = int_to_ptr.vmem [resolvable:$true] %s14
      %17 = dma.hbm_to_vmem [thread:$0]  %s0, 256, %s15, [#allocation3]
    $region5: #{tpu_custom_call.1} parent=1 // pred_fallthru
      _
    // Predicated region
    $region6: #{tpu_custom_call.1} parent=1 // pred_check
      _
    $region7: #{tpu_custom_call.1} parent=1 // pred_check_branch
      %19 = sbr.rel (0) target = $region9
    $region8: #{tpu_custom_call.1} parent=1 // pred_region
      %20 = dma.done [#allocation3], 256
    $region9: #{tpu_custom_call.1} parent=1 // pred_fallthru
      _
    %v21 = vld [vmem:[#allocation2] sm:$0xff]
    %v22 = vld [vmem:[#allocation2 + $0x8] sm:$0xff]
    %23 = vst [vmem:[#allocation5] sm:$0xff] %v21
    %24 = vst [vmem:[#allocation5 + $0x8] sm:$0xff] %v22
    // Predicated region
    $region10: #{tpu_custom_call.1} parent=1 // pred_check
      _
    $region11: #{tpu_custom_call.1} parent=1 // pred_check_branch
      %26 = sbr.rel (0) target = $region13
    $region12: #{tpu_custom_call.1} parent=1 // pred_region
      %s28 = ssub.s32 256, 256
      %29 = vsyncadd [#allocation4], %s28
      %s31 = sshll.u32 [#allocation5], 4
      %s32 = int_to_ptr.vmem [resolvable:$true] %s31
      %34 = dma.vmem_to_hbm [thread:$0]  %s32, 256, %s1, [#allocation4]
    $region13: #{tpu_custom_call.1} parent=1 // pred_fallthru
      _
    // Predicated region
    $region14: #{tpu_custom_call.1} parent=1 // pred_check
      _
    $region15: #{tpu_custom_call.1} parent=1 // pred_check_branch
      %36 = sbr.rel (0) target = $region17
    $region16: #{tpu_custom_call.1} parent=1 // pred_region
      %37 = dma.done [#allocation4], 256
    $region17: #{tpu_custom_call.1} parent=1 // pred_fallthru
      _
    %38 = vsyncpa [#allocation3], 1
    %39 = vsyncpa [#allocation4], 1

</llo_original>
